<compile_context>
chip_gen: v6e
topology: v6e:2x2x1
jax: 0.10.0
libtpu: 0.0.40
codegen_flags: <defaults>
</compile_context>

<pallas_src>
import math

import jax
import jax.numpy as jnp
from jax.experimental import pallas as pl
from jax.experimental.pallas import tpu as pltpu


# --------------------------------------------------------------------------
# Kernel: broadcast-add of the positional-encoding slab over the batch axis.
# --------------------------------------------------------------------------
def _add_pe_kernel(x_ref, pe_ref, o_ref):
    # x_ref / o_ref: (TILE_S, B, D) in VMEM;  pe_ref: (TILE_S, D) in VMEM.
    # pe broadcasts over the batch (middle) axis.
    o_ref[...] = x_ref[...] + pe_ref[...][:, None, :]


# --------------------------------------------------------------------------
# Constant buffer: pe[s, 2i] = sin(s * w_i), pe[s, 2i+1] = cos(s * w_i),
# w_i = exp(2i * (-ln(10000)/dim)).  Identical to the PyTorch register_buffer.
# --------------------------------------------------------------------------
def _build_pe(seq_len, dim, dtype):
    div_term = jnp.exp(
        jnp.arange(0, dim, 2, dtype=jnp.float32) * (-math.log(10000.0) / dim))
    position = jnp.arange(seq_len, dtype=jnp.float32)[:, None]
    angles = position * div_term                      # (seq_len, dim//2)
    pe = jnp.zeros((seq_len, dim), dtype=jnp.float32)
    pe = pe.at[:, 0::2].set(jnp.sin(angles))
    pe = pe.at[:, 1::2].set(jnp.cos(angles))
    return pe.astype(dtype)                           # cast once, outside kernel


def _choose_tile_s(S, B, D, itemsize, target_bytes=4 << 20):
    """Pick a sequence tile so one x block is ~<=4 MiB.  Double-buffered
    input + output blocks (~16 MiB) stay under the 32 MiB scoped-VMEM default
    on every TPU generation while keeping tiles as large as practical."""
    rows = max(1, target_bytes // max(1, B * D * itemsize))
    if rows >= S:
        return S                                      # whole array = one block
    if S < 8:
        return S
    return max(8, (rows // 8) * 8)                    # keep pe's sublane dim aligned


# --------------------------------------------------------------------------
# Public wrapper
# --------------------------------------------------------------------------
def positional_encoding(x, tile_s=None):
    """x: (S, B, D).  Returns x + pe[:S] (pe broadcast over the batch axis)."""
    S, B, D = x.shape
    pe = _build_pe(S, D, x.dtype)                     # (S, D) constant buffer

    tile = int(tile_s) if tile_s is not None else _choose_tile_s(
        S, B, D, jnp.dtype(x.dtype).itemsize)
    grid = (pl.cdiv(S, tile),)

    return pl.pallas_call(
        _add_pe_kernel,
        out_shape=jax.ShapeDtypeStruct((S, B, D), x.dtype),
        grid_spec=pltpu.PrefetchScalarGridSpec(
            num_scalar_prefetch=0,
            grid=grid,
            in_specs=[
                pl.BlockSpec((tile, B, D), lambda i: (i, 0, 0)),   # x
                pl.BlockSpec((tile, D), lambda i: (i, 0)),         # pe
            ],
            out_specs=pl.BlockSpec((tile, B, D), lambda i: (i, 0, 0)),
        ),
        compiler_params=pltpu.CompilerParams(
            dimension_semantics=("parallel",)),        # megacore split on v7x
        input_output_aliases={0: 0},                   # update x in place
    )(x, pe)


# --------------------------------------------------------------------------
# Pure-JAX reference mirroring the PyTorch buffer construction + forward.
# --------------------------------------------------------------------------
def positional_encoding_ref(x):
    S, _, D = x.shape
    div_term = jnp.exp(
        jnp.arange(0, D, 2, dtype=jnp.float32) * (-math.log(10000.0) / D))
    position = jnp.arange(S, dtype=jnp.float32)[:, None]
    pe = jnp.zeros((S, 1, D), dtype=jnp.float32)
    pe = pe.at[:, 0, 0::2].set(jnp.sin(position * div_term))
    pe = pe.at[:, 0, 1::2].set(jnp.cos(position * div_term))
    return x + pe.astype(x.dtype)


if __name__ == "__main__":
    key = jax.random.PRNGKey(0)
    S, B, D = 16, 2, 128      # seq=16, batch=2, hidden=128 (lane-dense last dim)
    x = jax.random.normal(key, (S, B, D), dtype=jnp.float32)

    # Reference first: x's buffer is aliased (donated) to the kernel output.
    ref = positional_encoding_ref(x)

    # tile_s=8 -> grid=(2,) so the tiled/pipelined path is actually exercised.
    out = positional_encoding(x, tile_s=8)
    out = jax.block_until_ready(out)

    assert out.shape == (S, B, D)
    assert jnp.allclose(out, ref, atol=1e-5, rtol=1e-5), "mismatch vs reference"

    print("KERNEL_OK")
</pallas_src>

<mosaic_0001>
module attributes {stable_mosaic.version = 11 : i64} {
  func.func @_add_pe_kernel(%arg0: i32, %arg1: memref<8x2x128xf32, #tpu.memory_space<vmem>>, %arg2: memref<8x128xf32, #tpu.memory_space<vmem>>, %arg3: memref<8x2x128xf32, #tpu.memory_space<vmem>>) attributes {dimension_semantics = [#tpu.dimension_semantics<parallel>], iteration_bounds = array<i64: 2>, scalar_prefetch = 0 : i64, scratch_operands = 0 : i64, tpu.core_type = #tpu.core_type<tc>, window_params = [{transform_indices = @transform_0, window_bounds = array<i64: 8, 2, 128>}, {transform_indices = @transform_1, window_bounds = array<i64: 8, 128>}, {transform_indices = @transform_2, window_bounds = array<i64: 8, 2, 128>}]} {
    %c0 = arith.constant 0 : index
    %c0_0 = arith.constant 0 : index
    %c0_1 = arith.constant 0 : index
    %0 = vector.load %arg1[%c0, %c0_0, %c0_1] : memref<8x2x128xf32, #tpu.memory_space<vmem>>, vector<8x2x128xf32>
    %c0_2 = arith.constant 0 : index
    %c0_3 = arith.constant 0 : index
    %1 = vector.load %arg2[%c0_2, %c0_3] : memref<8x128xf32, #tpu.memory_space<vmem>>, vector<8x128xf32>
    %2 = vector.shape_cast %1 : vector<8x128xf32> to vector<8x1x128xf32>
    %3 = vector.broadcast %2 : vector<8x1x128xf32> to vector<8x2x128xf32>
    %4 = arith.addf %0, %3 : vector<8x2x128xf32>
    %c0_4 = arith.constant 0 : index
    %c0_5 = arith.constant 0 : index
    %c0_6 = arith.constant 0 : index
    %5 = vector.load %arg3[%c0_4, %c0_5, %c0_6] : memref<8x2x128xf32, #tpu.memory_space<vmem>>, vector<8x2x128xf32>
    tpu.vector_store %arg3[%c0_4, %c0_5, %c0_6], %4 {strides = array<i32>} : memref<8x2x128xf32, #tpu.memory_space<vmem>>, vector<8x2x128xf32>,
    return
  }
  func.func @transform_0(%arg0: i32) -> (i32, i32, i32) {
    %c0_i32 = arith.constant 0 : i32
    %c0_i32_0 = arith.constant 0 : i32
    %c0_i32_1 = arith.constant 0 : i32
    return %arg0, %c0_i32, %c0_i32_0 : i32, i32, i32
  }
  func.func @transform_1(%arg0: i32) -> (i32, i32) {
    %c0_i32 = arith.constant 0 : i32
    %c0_i32_0 = arith.constant 0 : i32
    return %arg0, %c0_i32 : i32, i32
  }
  func.func @transform_2(%arg0: i32) -> (i32, i32, i32) {
    %c0_i32 = arith.constant 0 : i32
    %c0_i32_0 = arith.constant 0 : i32
    %c0_i32_1 = arith.constant 0 : i32
    return %arg0, %c0_i32, %c0_i32_0 : i32, i32, i32
  }
}

</mosaic_0001>

<llo_original>
// kernel: tpu_custom_call.1
$region0: #{tpu_custom_call.1}
  #allocation0 [shape = 'u32[]', space=smem, size = 0x4, offset = 0x4, fixed_abs, tag = 'smem constant byte address 0x4 - core index']
  #allocation1 [shape = 'u32[144,128]{1,0:T(1,128)}', space=vmem, size = 0x12000, scoped, tag = 'internal scratch']
  %s0 = inlined_call_operand.hbm [shape: f32[16,2,128], index: 0, kind: input, shape index: {}, may-alias: {0,2}]
  %s1 = inlined_call_operand.vmem [shape: f32[16,128], index: 1, kind: input, shape index: {}]
  %s2 = inlined_call_operand.hbm [shape: f32[16,2,128], index: 2, kind: output, shape index: {}, may-alias: {0,2}]
  %s3 = sld [smem:[#allocation0]]
  $region45: #{tpu_custom_call.1} parent=0
    _
  %s5 = ssub.s32 1, %s3
  %s6 = scalar_select 0, %s5, %s3
  $region1: #{tpu_custom_call.1} parent=0
    #allocation2 [shape = 'u8[16384]{0}', space=vmem, size = 0x4000, scoped, tag = 'input window, operand 0']
    #allocation3 [shape = 's32[2]{0}', space=sflag, size = 0x8, scoped, tag = 'scoped memory for tpu_custom_call.1']
    #allocation4 [shape = 's32[2]{0}', space=sflag, size = 0x8, scoped, tag = 'scoped memory for tpu_custom_call.1']
    #allocation5 [shape = 'u8[16384]{0}', space=vmem, size = 0x4000, scoped, tag = 'output window, operand 0']
    %7 = vsyncpa [#allocation3], 0
    %s8 = scalar_lea.sflag [#allocation3], 1
    %9 = vsyncpa %s8, 0
    %10 = vsyncpa [#allocation4], 0
    %s11 = scalar_lea.sflag [#allocation4], 1
    %12 = vsyncpa %s11, 0
    loop: start=0, step=1, limit=4
    $region2: #{tpu_custom_call.1} parent=1 // loop_pre_header
      _
    $region3: #{tpu_custom_call.1} parent=1 // loop_header
      %s14 = sphi 0, %s18
      %p15 = scmp.ge.s32.totalorder %s14, 4
      %s24 = sphi 0, %s26
      %s27 = sphi 0, %s24
      %s28 = sphi 0, %s27
      %s44 = sphi 0, %s28
      %s50 = sphi 0, %s52
      %s53 = sphi 0, %s50
      %s54 = sphi 0, %s53
      %s70 = sphi 0, %s54
      %s76 = sphi 0, %s78
      %s79 = sphi 0, %s76
      %s80 = sphi 0, %s79
      %s96 = sphi 0, %s80
    $region4: #{tpu_custom_call.1} parent=1 // loop_header_branch
      %17 = sbr.rel (%p15) target = $region8
    $region5: #{tpu_custom_call.1} parent=1 // loop_body
      %s19 = ssub.s32 %s14, 1
      %s20 = ssub.s32 %s14, 2
      %s21 = sadd.s32 %s14, 1
      %s22 = ssub.s32 %s14, %s21
      %p23 = scmp.eq.s32.totalorder %s22, 0
      %s25 = sadd.s32 %s24, 1
      %s26 = scalar_select %p23, %s24, %s25
      %p29 = pneg %p23
      %p30 = scmp.eq.s32.totalorder %s14, 1
      %p31 = por %p29, %p30
      %p32 = scmp.ne.s32.totalorder %s24, %s27
      %p33 = scmp.eq.s32.totalorder %s14, 0
      %p34 = por %p32, %p33
      %p35 = scmp.ne.s32.totalorder %s24, %s27
      %p36 = scmp.eq.s32.totalorder %s19, 1
      %p37 = por %p35, %p36
      %p38 = scmp.ne.s32.totalorder %s27, %s28
      %p39 = scmp.eq.s32.totalorder %s19, 0
      %p40 = por %p38, %p39
      %p41 = scmp.ne.s32.totalorder %s27, %s28
      %p42 = scmp.eq.s32.totalorder %s20, 1
      %p43 = por %p41, %p42
      %p45 = scmp.ne.s32.totalorder %s28, %s44
      %p46 = scmp.eq.s32.totalorder %s20, 0
      %p47 = por %p45, %p46
      %s48 = ssub.s32 %s14, %s21
      %p49 = scmp.eq.s32.totalorder %s48, 0
      %s51 = sadd.s32 %s50, 1
      %s52 = scalar_select %p49, %s50, %s51
      %p55 = pneg %p49
      %p56 = scmp.eq.s32.totalorder %s14, 1
      %p57 = por %p55, %p56
      %p58 = scmp.ne.s32.totalorder %s50, %s53
      %p59 = scmp.eq.s32.totalorder %s14, 0
      %p60 = por %p58, %p59
      %p61 = scmp.ne.s32.totalorder %s50, %s53
      %p62 = scmp.eq.s32.totalorder %s19, 1
      %p63 = por %p61, %p62
      %p64 = scmp.ne.s32.totalorder %s53, %s54
      %p65 = scmp.eq.s32.totalorder %s19, 0
      %p66 = por %p64, %p65
      %p67 = scmp.ne.s32.totalorder %s53, %s54
      %p68 = scmp.eq.s32.totalorder %s20, 1
      %p69 = por %p67, %p68
      %p71 = scmp.ne.s32.totalorder %s54, %s70
      %p72 = scmp.eq.s32.totalorder %s20, 0
      %p73 = por %p71, %p72
      %s74 = ssub.s32 %s14, %s21
      %p75 = scmp.eq.s32.totalorder %s74, 0
      %s77 = sadd.s32 %s76, 1
      %s78 = scalar_select %p75, %s76, %s77
      %p81 = pneg %p75
      %p82 = scmp.eq.s32.totalorder %s14, 1
      %p83 = por %p81, %p82
      %p84 = scmp.ne.s32.totalorder %s76, %s79
      %p85 = scmp.eq.s32.totalorder %s14, 0
      %p86 = por %p84, %p85
      %p87 = scmp.ne.s32.totalorder %s76, %s79
      %p88 = scmp.eq.s32.totalorder %s19, 1
      %p89 = por %p87, %p88
      %p90 = scmp.ne.s32.totalorder %s79, %s80
      %p91 = scmp.eq.s32.totalorder %s19, 0
      %p92 = por %p90, %p91
      %p93 = scmp.ne.s32.totalorder %s79, %s80
      %p94 = scmp.eq.s32.totalorder %s20, 1
      %p95 = por %p93, %p94
      %p97 = scmp.ne.s32.totalorder %s80, %s96
      %p98 = scmp.eq.s32.totalorder %s20, 0
      %p99 = por %p97, %p98
      %p100 = scmp.le.s32.totalorder 1, %s14
      %p101 = scmp.lt.s32.totalorder %s14, 3
      %p102 = pnand %p100, %p101
      %p103 = pneg %p102
      // Predicated region
      $region9: #{tpu_custom_call.1} parent=5 // pred_check
        _
      $region10: #{tpu_custom_call.1} parent=5 // pred_check_branch
        %105 = sbr.rel (%p102) target = $region12
      $region11: #{tpu_custom_call.1} parent=5 // pred_region
        %s106 = ssub.s32 %s14, 1
      $region12: #{tpu_custom_call.1} parent=5 // pred_fallthru
        _
      %p107 = scmp.lt.s32.totalorder %s14, 2
      // Predicated region
      $region13: #{tpu_custom_call.1} parent=5 // pred_check
        %p108 = pneg %p107
      $region14: #{tpu_custom_call.1} parent=5 // pred_check_branch
        %110 = sbr.rel (%p108) target = $region16
      $region15: #{tpu_custom_call.1} parent=5 // pred_region
        // Predicated region
        $region17: #{tpu_custom_call.1} parent=15 // pred_check
          %p111 = pneg %p34
        $region18: #{tpu_custom_call.1} parent=15 // pred_check_branch
          %113 = sbr.rel (%p111) target = $region20
        $region19: #{tpu_custom_call.1} parent=15 // pred_region
          %s114 = sand.u32 %s24, 1
          %s115 = scalar_lea.sflag [#allocation3], %s114
          %s116 = sand.u32 %s24, 1
          %s117 = smul.addr %s116, 16
          %s118 = scalar_lea.vmem [#allocation2], %s117
          %s119 = smul.u32 8, %s14
          %s121 = ssub.s32 256, 256
          %122 = vsyncadd %s115, %s121
          %s123 = smul.addr %s119, 32
          %s124 = scalar_lea.hbm %s0, %s123
          %s125 = sshll.u32 %s118, 4
          %s126 = int_to_ptr.vmem [resolvable:$true] %s125
          %131 = dma.hbm_to_vmem [thread:$0]  %s124, 256, %s126, %s115, 32, 32, 2
        $region20: #{tpu_custom_call.1} parent=15 // pred_fallthru
          _
        // Predicated region
        $region21: #{tpu_custom_call.1} parent=15 // pred_check
          %p132 = pneg %p60
        $region22: #{tpu_custom_call.1} parent=15 // pred_check_branch
          %134 = sbr.rel (%p132) target = $region24
        $region23: #{tpu_custom_call.1} parent=15 // pred_region
          %p135 = scmp.lt.s32.totalorder %s14, 1
          %s136 = scalar_select %p135, %s14, 1
          %s137 = smul.addr %s136, 8
          %s138 = scalar_lea.vmem %s1, %s137
        $region24: #{tpu_custom_call.1} parent=15 // pred_fallthru
          _
      $region16: #{tpu_custom_call.1} parent=5 // pred_fallthru
        _
      %p139 = scmp.le.s32.totalorder 1, %s14
      %p140 = scmp.lt.s32.totalorder %s14, 3
      %p141 = pnand %p139, %p140
      %p142 = pneg %p141
      // Predicated region
      $region25: #{tpu_custom_call.1} parent=5 // pred_check
        _
      $region26: #{tpu_custom_call.1} parent=5 // pred_check_branch
        %144 = sbr.rel (%p141) target = $region28
      $region27: #{tpu_custom_call.1} parent=5 // pred_region
        %s145 = ssub.s32 %s14, 1
        %s146 = sand.u32 %s27, 1
        %s147 = scalar_lea.sflag [#allocation3], %s146
        %s148 = sand.u32 %s27, 1
        %s149 = smul.addr %s148, 16
        %s150 = scalar_lea.vmem [#allocation2], %s149
        // Predicated region
        $region29: #{tpu_custom_call.1} parent=27 // pred_check
          %p151 = pneg %p40
        $region30: #{tpu_custom_call.1} parent=27 // pred_check_branch
          %153 = sbr.rel (%p151) target = $region32
        $region31: #{tpu_custom_call.1} parent=27 // pred_region
          %154 = dma.done %s147, 256
        $region32: #{tpu_custom_call.1} parent=27 // pred_fallthru
          _
        %s155 = sand.u32 %s27, 1
        %s156 = scalar_lea.sflag [#allocation3], %s155
        %s157 = sand.u32 %s27, 1
        %s158 = smul.addr %s157, 16
        %s159 = scalar_lea.vmem [#allocation2], %s158
        %p160 = pneg %p40
        %p161 = pneg %p37
        %p162 = scmp.lt.s32.totalorder %s19, 1
        %s163 = scalar_select %p162, %s19, 1
        %s164 = smul.addr %s163, 8
        %s165 = scalar_lea.vmem %s1, %s164
        %p166 = pneg %p66
        %p167 = pneg %p63
        %p168 = pneg %p92
        %p169 = pneg %p89
        %s170 = sand.u32 %s79, 1
        %s171 = scalar_lea.sflag [#allocation4], %s170
        %s172 = sand.u32 %s79, 1
        %s173 = smul.addr %s172, 16
        %s174 = scalar_lea.vmem [#allocation5], %s173
        %s175 = smul.u32 8, %s19
        %p176 = scmp.lt.s32.totalorder %s19, 1
        %s177 = scalar_select %p176, %s19, 1
        %s178 = smul.addr %s177, 8
        %s179 = scalar_lea.vmem %s1, %s178
        %s180 = smul.u32 8, %s19
        %v181 = vld [vmem:[%s150] sm:$0x3]
        %v182 = vld [vmem:[%s150 + $0x2] sm:$0x3]
        %v183 = vld [vmem:[%s150 + $0x4] sm:$0x3]
        %v184 = vld [vmem:[%s150 + $0x6] sm:$0x3]
        %v185 = vld [vmem:[%s150 + $0x8] sm:$0x3]
        %v186 = vld [vmem:[%s150 + $0xa] sm:$0x3]
        %v187 = vld [vmem:[%s150 + $0xc] sm:$0x3]
        %v188 = vld [vmem:[%s150 + $0xe] sm:$0x3]
        %v189 = vld [vmem:[%s179] sm:$0xff]
        %v191 = vcombine.high %v189, %v189
        %v193 = vunpack.c.l.s4 1966171168
        %v194 = vunpack.c.0.s8 %v193
        %v195 = vlaneseq
        %v196 = vshrl.u32 %v195, 7
        %v197 = vsub.s32 %v194, %v196
        %v198 = vrot.slane %v189, %v197
        %v200 = vunpack.c.l.s4 1966171168
        %v201 = vunpack.c.0.s8 %v200
        %v202 = vlaneseq
        %v203 = vshrl.u32 %v202, 7
        %v204 = vsub.s32 %v201, %v203
        %v205 = vrot.slane %v191, %v204
        %v206 = vcombine.high %v198, %v198
        %v207 = vcombine.high %v205, %v205
        %v209 = vunpack.c.l.s4 1966171168
        %v210 = vunpack.c.0.s8 %v209
        %v211 = vlaneseq
        %v212 = vshrl.u32 %v211, 7
        %v213 = vsub.s32 %v210, %v212
        %v214 = vrot.slane %v198, %v213
        %v216 = vunpack.c.l.s4 1966171168
        %v217 = vunpack.c.0.s8 %v216
        %v218 = vlaneseq
        %v219 = vshrl.u32 %v218, 7
        %v220 = vsub.s32 %v217, %v219
        %v221 = vrot.slane %v205, %v220
        %v223 = vunpack.c.l.s4 1966171168
        %v224 = vunpack.c.0.s8 %v223
        %v225 = vlaneseq
        %v226 = vshrl.u32 %v225, 7
        %v227 = vsub.s32 %v224, %v226
        %v228 = vrot.slane %v206, %v227
        %v230 = vunpack.c.l.s4 1966171168
        %v231 = vunpack.c.0.s8 %v230
        %v232 = vlaneseq
        %v233 = vshrl.u32 %v232, 7
        %v234 = vsub.s32 %v231, %v233
        %v235 = vrot.slane %v207, %v234
        %v236 = vcombine.high %v214, %v214
        %v237 = vcombine.high %v221, %v221
        %v238 = vcombine.high %v228, %v228
        %v239 = vcombine.high %v235, %v235
        %v240 = vlaneseq
        %v241 = vshrl.u32 %v240, 7
        %v242 = vsub.s32 0, %v241
        %v243 = vrot.slane %v214, %v242
        %v244 = vlaneseq
        %v245 = vshrl.u32 %v244, 7
        %v246 = vsub.s32 0, %v245
        %v247 = vrot.slane %v228, %v246
        %v248 = vlaneseq
        %v249 = vshrl.u32 %v248, 7
        %v250 = vsub.s32 0, %v249
        %v251 = vrot.slane %v236, %v250
        %v252 = vlaneseq
        %v253 = vshrl.u32 %v252, 7
        %v254 = vsub.s32 0, %v253
        %v255 = vrot.slane %v238, %v254
        %v256 = vlaneseq
        %v257 = vshrl.u32 %v256, 7
        %v258 = vsub.s32 0, %v257
        %v259 = vrot.slane %v221, %v258
        %v260 = vlaneseq
        %v261 = vshrl.u32 %v260, 7
        %v262 = vsub.s32 0, %v261
        %v263 = vrot.slane %v235, %v262
        %v264 = vlaneseq
        %v265 = vshrl.u32 %v264, 7
        %v266 = vsub.s32 0, %v265
        %v267 = vrot.slane %v237, %v266
        %v268 = vlaneseq
        %v269 = vshrl.u32 %v268, 7
        %v270 = vsub.s32 0, %v269
        %v271 = vrot.slane %v239, %v270
        %v280 = vadd.f32 %v181, %v243
        %v281 = vadd.f32 %v182, %v247
        %v282 = vadd.f32 %v183, %v251
        %v283 = vadd.f32 %v184, %v255
        %v284 = vadd.f32 %v185, %v259
        %v285 = vadd.f32 %v186, %v263
        %v286 = vadd.f32 %v187, %v267
        %v287 = vadd.f32 %v188, %v271
        %288 = vst [vmem:[%s174] sm:$0x3] %v280
        %289 = vst [vmem:[%s174 + $0x2] sm:$0x3] %v281
        %290 = vst [vmem:[%s174 + $0x4] sm:$0x3] %v282
        %291 = vst [vmem:[%s174 + $0x6] sm:$0x3] %v283
        %292 = vst [vmem:[%s174 + $0x8] sm:$0x3] %v284
        %293 = vst [vmem:[%s174 + $0xa] sm:$0x3] %v285
        %294 = vst [vmem:[%s174 + $0xc] sm:$0x3] %v286
        %295 = vst [vmem:[%s174 + $0xe] sm:$0x3] %v287
        %s296 = sand.u32 %s79, 1
        %s297 = scalar_lea.sflag [#allocation4], %s296
        %s298 = sand.u32 %s79, 1
        %s299 = smul.addr %s298, 16
        %s300 = scalar_lea.vmem [#allocation5], %s299
        // Predicated region
        $region33: #{tpu_custom_call.1} parent=27 // pred_check
          %p301 = pneg %p89
        $region34: #{tpu_custom_call.1} parent=27 // pred_check_branch
          %303 = sbr.rel (%p301) target = $region36
        $region35: #{tpu_custom_call.1} parent=27 // pred_region
          %s304 = smul.u32 8, %s19
          %s306 = ssub.s32 256, 256
          %307 = vsyncadd %s297, %s306
          %s308 = smul.addr %s304, 32
          %s309 = scalar_lea.hbm %s2, %s308
          %s310 = sshll.u32 %s300, 4
          %s311 = int_to_ptr.vmem [resolvable:$true] %s310
          %316 = dma.vmem_to_hbm [thread:$0]  %s311, 256, %s309, %s297, 32, 32, 2
        $region36: #{tpu_custom_call.1} parent=27 // pred_fallthru
          _
      $region28: #{tpu_custom_call.1} parent=5 // pred_fallthru
        _
      %p317 = scmp.le.s32.totalorder 2, %s14
      // Predicated region
      $region37: #{tpu_custom_call.1} parent=5 // pred_check
        %p318 = pneg %p317
      $region38: #{tpu_custom_call.1} parent=5 // pred_check_branch
        %320 = sbr.rel (%p318) target = $region40
      $region39: #{tpu_custom_call.1} parent=5 // pred_region
        %s321 = ssub.s32 %s14, 2
        // Predicated region
        $region41: #{tpu_custom_call.1} parent=39 // pred_check
          %p322 = pneg %p95
        $region42: #{tpu_custom_call.1} parent=39 // pred_check_branch
          %324 = sbr.rel (%p322) target = $region44
        $region43: #{tpu_custom_call.1} parent=39 // pred_region
          %s325 = sand.u32 %s80, 1
          %s326 = scalar_lea.sflag [#allocation4], %s325
          %s327 = sand.u32 %s80, 1
          %s328 = smul.addr %s327, 16
          %s329 = scalar_lea.vmem [#allocation5], %s328
          %330 = dma.done %s326, 256
        $region44: #{tpu_custom_call.1} parent=39 // pred_fallthru
          _
      $region40: #{tpu_custom_call.1} parent=5 // pred_fallthru
        _
    $region6: #{tpu_custom_call.1} parent=1 // loop_footer
      %s18 = sadd.s32 1, %s14
    $region7: #{tpu_custom_call.1} parent=1 // loop_footer_branch
      %13 = sbr.rel target = $region3
    $region8: #{tpu_custom_call.1} parent=1 // loop_exit
      _
    %331 = vsyncpa [#allocation3], 1
    %s332 = scalar_lea.sflag [#allocation3], 1
    %333 = vsyncpa %s332, 1
    %334 = vsyncpa [#allocation4], 1
    %s335 = scalar_lea.sflag [#allocation4], 1
    %336 = vsyncpa %s335, 1

</llo_original>
